<compile_context>
chip_gen: v5e
topology: v5e:2x2
jax: 0.10.0
libtpu: 0.0.40
codegen_flags: <defaults>
</compile_context>

<pallas_src>
import functools

import jax
import jax.numpy as jnp
from jax.experimental import pallas as pl
from jax.experimental.pallas import tpu as pltpu

LANE = 128  # TPU lane width; on-chip feature slabs are padded to this.


def _round_up(x, m):
    return ((x + m - 1) // m) * m


# ----------------------------------------------------------------------------
# Fused MLP kernel: one batch tile, all (folded) layers, activation stays on-chip.
# ----------------------------------------------------------------------------
def _fused_mlp_kernel(x_ref, w_ref, b_ref, o_ref, *, sigmoid_flags, space_dim):
    """x_ref: (TB, space_dim) f32; w_ref: (Lf, 128, 128) bf16 holding W^T padded;
    b_ref: (Lf, 1, 128) f32; o_ref: (TB, space_dim)."""
    tb = x_ref.shape[0]
    x = x_ref[...].astype(jnp.float32)
    # Pad the true feature lanes up to the 128-lane slab once, in VMEM.  Zero
    # weight rows beyond each layer's fan-in quarantine the pad lanes.
    if space_dim < LANE:
        h = jnp.concatenate(
            [x, jnp.zeros((tb, LANE - space_dim), jnp.float32)], axis=-1)
    else:
        h = x

    for layer, use_sigmoid in enumerate(sigmoid_flags):  # static Python loop
        # bf16 operands feed the MXU at native rate; accumulate in f32.
        h = jnp.dot(h.astype(jnp.bfloat16), w_ref[layer],
                    preferred_element_type=jnp.float32)
        h = h + b_ref[layer]                      # (1, 128) broadcasts over rows
        if use_sigmoid:
            # sigmoid(x) == 0.5*tanh(0.5*x)+0.5 : single EUP push per element.
            h = 0.5 * jnp.tanh(0.5 * h) + 0.5

    # Write only the real output lanes back to HBM.
    o_ref[...] = h[:, :space_dim].astype(o_ref.dtype)


def autoencoder_forward(params, x, *, block_batch=2048):
    """x: (B, space_dim) float32. Returns (B, space_dim)."""
    B, space_dim = x.shape
    W = params["W_stacked"]      # (Lf, 128, 128) bf16, pre-transposed + zero-padded
    bias = params["b_stacked"]   # (Lf, 1, 128) f32, zero-padded
    Lf = W.shape[0]
    sigmoid_flags = params["sigmoid_flags"]

    # Batch tile: large enough to amortize the ~0.35 us per-grid-step overhead,
    # but aim for >=4 grid steps at large B so both v7x TensorCores get work.
    TB = min(block_batch, _round_up(pl.cdiv(B, 4), 8))
    grid_b = pl.cdiv(B, TB)      # ragged last block handled by Pallas (masked store)

    # VMEM budget with headroom: double-buffered in/out tiles + weight/bias slabs
    # (x2 buffers) + ~2 live (TB, 128) f32 activation temps.
    est = (2 * 2 * TB * space_dim * 4
           + 2 * (W.size * W.dtype.itemsize + bias.size * bias.dtype.itemsize)
           + 2 * TB * LANE * 4)
    vmem_limit = int(min(48 * 1024 * 1024, max(16 * 1024 * 1024, 4 * est)))

    kernel = functools.partial(_fused_mlp_kernel,
                               sigmoid_flags=sigmoid_flags,
                               space_dim=space_dim)
    return pl.pallas_call(
        kernel,
        out_shape=jax.ShapeDtypeStruct((B, space_dim), x.dtype),
        grid_spec=pltpu.PrefetchScalarGridSpec(
            num_scalar_prefetch=0,
            grid=(grid_b,),
            in_specs=[
                # Last block dim equals the full array dim (space_dim) -> legal,
                # and no zero lanes travel through HBM.
                pl.BlockSpec((TB, space_dim), lambda i: (i, 0)),
                pl.BlockSpec((Lf, LANE, LANE), lambda i: (0, 0, 0)),
                pl.BlockSpec((Lf, 1, LANE), lambda i: (0, 0, 0)),
            ],
            out_specs=pl.BlockSpec((TB, space_dim), lambda i: (i, 0)),
        ),
        compiler_params=pltpu.CompilerParams(
            dimension_semantics=("parallel",),
            vmem_limit_bytes=vmem_limit,
        ),
    )(x, W, bias)


# ----------------------------------------------------------------------------
# Parameter construction mirroring Autoencoder.__init__ (PyTorch Linear init:
# uniform(-1/sqrt(fan_in), 1/sqrt(fan_in)) for weight and bias).  Weights are
# pre-transposed, the two no-activation layers are folded, and everything is
# zero-padded to 128 lanes ONCE here.
# ----------------------------------------------------------------------------
def _init_linear(key, in_f, out_f, dtype=jnp.float32):
    kw, kb = jax.random.split(key)
    bound = 1.0 / jnp.sqrt(jnp.array(in_f, dtype))
    w = jax.random.uniform(kw, (out_f, in_f), dtype, -bound, bound)  # torch (out, in)
    b = jax.random.uniform(kb, (out_f,), dtype, -bound, bound)
    return w, b


def init_autoencoder_params(key, space_dim, hidden_units, n_z, dtype=jnp.float32):
    n_layers = len(hidden_units)
    # Layer dims: encoder then decoder, exactly as in the PyTorch module.
    dims = ([space_dim] + list(hidden_units) + [n_z]
            + list(hidden_units[::-1]) + [space_dim])
    L = len(dims) - 1  # total Linear layers = 2 * (n_layers + 1)
    assert max(dims) <= LANE, "feature dims must fit in one 128-lane slab"

    keys = jax.random.split(key, L)
    raw_w, raw_b, raw_sig = [], [], []
    for i in range(L):
        in_f, out_f = dims[i], dims[i + 1]
        w, b = _init_linear(keys[i], in_f, out_f, dtype)
        raw_w.append(w)
        raw_b.append(b)
        # Sigmoid on every layer except encoder-last and decoder-last.
        raw_sig.append(not (i == n_layers or i == L - 1))

    # Fold encoder-last (h_last -> n_z, no act) with decoder-first (n_z -> h_last):
    #   h = sigmoid((x W_e^T + b_e) W_d^T + b_d) = sigmoid(x (W_d W_e)^T + (W_d b_e + b_d))
    folded = []
    i = 0
    while i < L:
        if i == n_layers:
            w_e, b_e = raw_w[i], raw_b[i]
            w_d, b_d = raw_w[i + 1], raw_b[i + 1]
            w_f = w_d @ w_e                 # (h_last, h_last), PyTorch (out, in) layout
            b_f = w_d @ b_e + b_d
            folded.append((w_f, b_f, raw_sig[i + 1]))   # decoder-first has sigmoid
            i += 2
        else:
            folded.append((raw_w[i], raw_b[i], raw_sig[i]))
            i += 1

    Lf = len(folded)
    W_stacked = jnp.zeros((Lf, LANE, LANE), jnp.bfloat16)
    b_stacked = jnp.zeros((Lf, 1, LANE), jnp.float32)
    sigmoid_flags = []
    for j, (w, b, sig) in enumerate(folded):
        out_f, in_f = w.shape
        # Pre-transpose to (in, out); zero-pad to (128, 128).  Zero rows beyond
        # in_f guarantee pad-lane activations never contaminate real lanes.
        W_stacked = W_stacked.at[j, :in_f, :out_f].set(w.T.astype(jnp.bfloat16))
        b_stacked = b_stacked.at[j, 0, :out_f].set(b.astype(jnp.float32))
        sigmoid_flags.append(bool(sig))

    return {
        "W_stacked": W_stacked,
        "b_stacked": b_stacked,
        "sigmoid_flags": tuple(sigmoid_flags),
        "raw_w": raw_w,         # unfused f32 params for the pure-JAX reference
        "raw_b": raw_b,
        "raw_sig": tuple(raw_sig),
        "n_layers": n_layers,
    }


def autoencoder_forward_ref(params, x):
    """Pure-JAX reference: unfused, f32, exact PyTorch forward semantics."""
    for w, b, use_sig in zip(params["raw_w"], params["raw_b"], params["raw_sig"]):
        x = x @ w.T + b
        if use_sig:
            x = jax.nn.sigmoid(x)
    return x


if __name__ == "__main__":
    # Small shapes consistent with the module's forward.
    space_dim = 16
    hidden_units = (32, 16)
    n_z = 8
    batch = 8

    key = jax.random.PRNGKey(0)
    k_params, k_x = jax.random.split(key)
    params = init_autoencoder_params(k_params, space_dim, hidden_units, n_z)
    x = jax.random.normal(k_x, (batch, space_dim), dtype=jnp.float32)

    out = jax.block_until_ready(autoencoder_forward(params, x))
    ref = jax.block_until_ready(autoencoder_forward_ref(params, x))

    assert out.shape == (batch, space_dim)
    # bf16 matmul operands + folded layer => loosened tolerance vs f32 reference.
    max_err = float(jnp.max(jnp.abs(out - ref)))
    assert jnp.allclose(out, ref, atol=3e-2, rtol=3e-2), f"max abs err {max_err}"

    # Ragged batch (not a multiple of 8 / of the tile): no wrapper-side padding.
    x2 = jax.random.normal(jax.random.PRNGKey(3), (5, space_dim), dtype=jnp.float32)
    out2 = jax.block_until_ready(autoencoder_forward(params, x2))
    ref2 = autoencoder_forward_ref(params, x2)
    assert out2.shape == (5, space_dim)
    assert jnp.allclose(out2, ref2, atol=3e-2, rtol=3e-2)

    print("KERNEL_OK")
</pallas_src>

<mosaic_0001>
module attributes {stable_mosaic.version = 11 : i64} {
  func.func @_fused_mlp_kernel(%arg0: i32, %arg1: memref<8x16xf32, #tpu.memory_space<vmem>>, %arg2: memref<5x128x128xbf16, #tpu.memory_space<vmem>>, %arg3: memref<5x1x128xf32, #tpu.memory_space<vmem>>, %arg4: memref<8x16xf32, #tpu.memory_space<vmem>>) attributes {dimension_semantics = [#tpu.dimension_semantics<parallel>], iteration_bounds = array<i64: 1>, scalar_prefetch = 0 : i64, scratch_operands = 0 : i64, tpu.core_type = #tpu.core_type<tc>, window_params = [{transform_indices = @transform_0, window_bounds = array<i64: 8, 16>}, {pipeline_mode = #tpu.pipeline_mode<synchronous>, transform_indices = @transform_1, window_bounds = array<i64: 5, 128, 128>}, {pipeline_mode = #tpu.pipeline_mode<synchronous>, transform_indices = @transform_2, window_bounds = array<i64: 5, 1, 128>}, {transform_indices = @transform_3, window_bounds = array<i64: 8, 16>}]} {
    %c0 = arith.constant 0 : index
    %c0_0 = arith.constant 0 : index
    %0 = vector.load %arg1[%c0, %c0_0] : memref<8x16xf32, #tpu.memory_space<vmem>>, vector<8x16xf32>
    %cst = arith.constant 0.000000e+00 : f32
    %1 = vector.broadcast %cst : f32 to vector<8x112xf32>
    %2 = tpu.concatenate %0, %1 in 1 : vector<8x16xf32>, vector<8x112xf32> -> vector<8x128xf32>
    %3 = arith.truncf %2 : vector<8x128xf32> to vector<8x128xbf16>
    %c0_1 = arith.constant 0 : index
    %c0_2 = arith.constant 0 : index
    %c0_3 = arith.constant 0 : index
    %4 = vector.load %arg2[%c0_1, %c0_2, %c0_3] : memref<5x128x128xbf16, #tpu.memory_space<vmem>>, vector<1x128x128xbf16>
    %5 = vector.shape_cast %4 : vector<1x128x128xbf16> to vector<128x128xbf16>
    %cst_4 = arith.constant dense<0.000000e+00> : vector<8x128xf32>
    %6 = tpu.matmul %3, %5, %cst_4 {dimension_numbers = #tpu.dot_dimension_numbers<[1], [0], [0], [1], [0, 0, 1, 1], [], []>} : vector<8x128xbf16>, vector<128x128xbf16>, vector<8x128xf32> -> vector<8x128xf32>
    %c0_5 = arith.constant 0 : index
    %c0_6 = arith.constant 0 : index
    %c0_7 = arith.constant 0 : index
    %7 = vector.load %arg3[%c0_5, %c0_6, %c0_7] : memref<5x1x128xf32, #tpu.memory_space<vmem>>, vector<1x1x128xf32>
    %8 = vector.shape_cast %7 : vector<1x1x128xf32> to vector<1x128xf32>
    %9 = vector.broadcast %8 : vector<1x128xf32> to vector<8x128xf32>
    %10 = arith.addf %6, %9 : vector<8x128xf32>
    %cst_8 = arith.constant 5.000000e-01 : f32
    %11 = vector.broadcast %cst_8 : f32 to vector<8x128xf32>
    %12 = arith.mulf %11, %10 : vector<8x128xf32>
    %13 = math.tanh %12 : vector<8x128xf32>
    %cst_9 = arith.constant 5.000000e-01 : f32
    %14 = vector.broadcast %cst_9 : f32 to vector<8x128xf32>
    %15 = arith.mulf %14, %13 : vector<8x128xf32>
    %cst_10 = arith.constant 5.000000e-01 : f32
    %16 = vector.broadcast %cst_10 : f32 to vector<8x128xf32>
    %17 = arith.addf %15, %16 : vector<8x128xf32>
    %18 = arith.truncf %17 : vector<8x128xf32> to vector<8x128xbf16>
    %c1 = arith.constant 1 : index
    %c0_11 = arith.constant 0 : index
    %c0_12 = arith.constant 0 : index
    %19 = vector.load %arg2[%c1, %c0_11, %c0_12] : memref<5x128x128xbf16, #tpu.memory_space<vmem>>, vector<1x128x128xbf16>
    %20 = vector.shape_cast %19 : vector<1x128x128xbf16> to vector<128x128xbf16>
    %cst_13 = arith.constant dense<0.000000e+00> : vector<8x128xf32>
    %21 = tpu.matmul %18, %20, %cst_13 {dimension_numbers = #tpu.dot_dimension_numbers<[1], [0], [0], [1], [0, 0, 1, 1], [], []>} : vector<8x128xbf16>, vector<128x128xbf16>, vector<8x128xf32> -> vector<8x128xf32>
    %c1_14 = arith.constant 1 : index
    %c0_15 = arith.constant 0 : index
    %c0_16 = arith.constant 0 : index
    %22 = vector.load %arg3[%c1_14, %c0_15, %c0_16] : memref<5x1x128xf32, #tpu.memory_space<vmem>>, vector<1x1x128xf32>
    %23 = vector.shape_cast %22 : vector<1x1x128xf32> to vector<1x128xf32>
    %24 = vector.broadcast %23 : vector<1x128xf32> to vector<8x128xf32>
    %25 = arith.addf %21, %24 : vector<8x128xf32>
    %cst_17 = arith.constant 5.000000e-01 : f32
    %26 = vector.broadcast %cst_17 : f32 to vector<8x128xf32>
    %27 = arith.mulf %26, %25 : vector<8x128xf32>
    %28 = math.tanh %27 : vector<8x128xf32>
    %cst_18 = arith.constant 5.000000e-01 : f32
    %29 = vector.broadcast %cst_18 : f32 to vector<8x128xf32>
    %30 = arith.mulf %29, %28 : vector<8x128xf32>
    %cst_19 = arith.constant 5.000000e-01 : f32
    %31 = vector.broadcast %cst_19 : f32 to vector<8x128xf32>
    %32 = arith.addf %30, %31 : vector<8x128xf32>
    %33 = arith.truncf %32 : vector<8x128xf32> to vector<8x128xbf16>
    %c2 = arith.constant 2 : index
    %c0_20 = arith.constant 0 : index
    %c0_21 = arith.constant 0 : index
    %34 = vector.load %arg2[%c2, %c0_20, %c0_21] : memref<5x128x128xbf16, #tpu.memory_space<vmem>>, vector<1x128x128xbf16>
    %35 = vector.shape_cast %34 : vector<1x128x128xbf16> to vector<128x128xbf16>
    %cst_22 = arith.constant dense<0.000000e+00> : vector<8x128xf32>
    %36 = tpu.matmul %33, %35, %cst_22 {dimension_numbers = #tpu.dot_dimension_numbers<[1], [0], [0], [1], [0, 0, 1, 1], [], []>} : vector<8x128xbf16>, vector<128x128xbf16>, vector<8x128xf32> -> vector<8x128xf32>
    %c2_23 = arith.constant 2 : index
    %c0_24 = arith.constant 0 : index
    %c0_25 = arith.constant 0 : index
    %37 = vector.load %arg3[%c2_23, %c0_24, %c0_25] : memref<5x1x128xf32, #tpu.memory_space<vmem>>, vector<1x1x128xf32>
    %38 = vector.shape_cast %37 : vector<1x1x128xf32> to vector<1x128xf32>
    %39 = vector.broadcast %38 : vector<1x128xf32> to vector<8x128xf32>
    %40 = arith.addf %36, %39 : vector<8x128xf32>
    %cst_26 = arith.constant 5.000000e-01 : f32
    %41 = vector.broadcast %cst_26 : f32 to vector<8x128xf32>
    %42 = arith.mulf %41, %40 : vector<8x128xf32>
    %43 = math.tanh %42 : vector<8x128xf32>
    %cst_27 = arith.constant 5.000000e-01 : f32
    %44 = vector.broadcast %cst_27 : f32 to vector<8x128xf32>
    %45 = arith.mulf %44, %43 : vector<8x128xf32>
    %cst_28 = arith.constant 5.000000e-01 : f32
    %46 = vector.broadcast %cst_28 : f32 to vector<8x128xf32>
    %47 = arith.addf %45, %46 : vector<8x128xf32>
    %48 = arith.truncf %47 : vector<8x128xf32> to vector<8x128xbf16>
    %c3 = arith.constant 3 : index
    %c0_29 = arith.constant 0 : index
    %c0_30 = arith.constant 0 : index
    %49 = vector.load %arg2[%c3, %c0_29, %c0_30] : memref<5x128x128xbf16, #tpu.memory_space<vmem>>, vector<1x128x128xbf16>
    %50 = vector.shape_cast %49 : vector<1x128x128xbf16> to vector<128x128xbf16>
    %cst_31 = arith.constant dense<0.000000e+00> : vector<8x128xf32>
    %51 = tpu.matmul %48, %50, %cst_31 {dimension_numbers = #tpu.dot_dimension_numbers<[1], [0], [0], [1], [0, 0, 1, 1], [], []>} : vector<8x128xbf16>, vector<128x128xbf16>, vector<8x128xf32> -> vector<8x128xf32>
    %c3_32 = arith.constant 3 : index
    %c0_33 = arith.constant 0 : index
    %c0_34 = arith.constant 0 : index
    %52 = vector.load %arg3[%c3_32, %c0_33, %c0_34] : memref<5x1x128xf32, #tpu.memory_space<vmem>>, vector<1x1x128xf32>
    %53 = vector.shape_cast %52 : vector<1x1x128xf32> to vector<1x128xf32>
    %54 = vector.broadcast %53 : vector<1x128xf32> to vector<8x128xf32>
    %55 = arith.addf %51, %54 : vector<8x128xf32>
    %cst_35 = arith.constant 5.000000e-01 : f32
    %56 = vector.broadcast %cst_35 : f32 to vector<8x128xf32>
    %57 = arith.mulf %56, %55 : vector<8x128xf32>
    %58 = math.tanh %57 : vector<8x128xf32>
    %cst_36 = arith.constant 5.000000e-01 : f32
    %59 = vector.broadcast %cst_36 : f32 to vector<8x128xf32>
    %60 = arith.mulf %59, %58 : vector<8x128xf32>
    %cst_37 = arith.constant 5.000000e-01 : f32
    %61 = vector.broadcast %cst_37 : f32 to vector<8x128xf32>
    %62 = arith.addf %60, %61 : vector<8x128xf32>
    %63 = arith.truncf %62 : vector<8x128xf32> to vector<8x128xbf16>
    %c4 = arith.constant 4 : index
    %c0_38 = arith.constant 0 : index
    %c0_39 = arith.constant 0 : index
    %64 = vector.load %arg2[%c4, %c0_38, %c0_39] : memref<5x128x128xbf16, #tpu.memory_space<vmem>>, vector<1x128x128xbf16>
    %65 = vector.shape_cast %64 : vector<1x128x128xbf16> to vector<128x128xbf16>
    %cst_40 = arith.constant dense<0.000000e+00> : vector<8x128xf32>
    %66 = tpu.matmul %63, %65, %cst_40 {dimension_numbers = #tpu.dot_dimension_numbers<[1], [0], [0], [1], [0, 0, 1, 1], [], []>} : vector<8x128xbf16>, vector<128x128xbf16>, vector<8x128xf32> -> vector<8x128xf32>
    %c4_41 = arith.constant 4 : index
    %c0_42 = arith.constant 0 : index
    %c0_43 = arith.constant 0 : index
    %67 = vector.load %arg3[%c4_41, %c0_42, %c0_43] : memref<5x1x128xf32, #tpu.memory_space<vmem>>, vector<1x1x128xf32>
    %68 = vector.shape_cast %67 : vector<1x1x128xf32> to vector<1x128xf32>
    %69 = vector.broadcast %68 : vector<1x128xf32> to vector<8x128xf32>
    %70 = arith.addf %66, %69 : vector<8x128xf32>
    %71 = vector.extract_strided_slice %70 {offsets = [0, 0], sizes = [8, 16], strides = [1, 1]} : vector<8x128xf32> to vector<8x16xf32>
    %c0_44 = arith.constant 0 : index
    %c0_45 = arith.constant 0 : index
    %72 = vector.load %arg4[%c0_44, %c0_45] : memref<8x16xf32, #tpu.memory_space<vmem>>, vector<8x16xf32>
    tpu.vector_store %arg4[%c0_44, %c0_45], %71 {strides = array<i32>} : memref<8x16xf32, #tpu.memory_space<vmem>>, vector<8x16xf32>,
    return
  }
  func.func @transform_0(%arg0: i32) -> (i32, i32) {
    %c0_i32 = arith.constant 0 : i32
    %c0_i32_0 = arith.constant 0 : i32
    return %arg0, %c0_i32 : i32, i32
  }
  func.func @transform_1(%arg0: i32) -> (i32, i32, i32) {
    %c0_i32 = arith.constant 0 : i32
    %c0_i32_0 = arith.constant 0 : i32
    %c0_i32_1 = arith.constant 0 : i32
    %c0_i32_2 = arith.constant 0 : i32
    return %c0_i32, %c0_i32_0, %c0_i32_1 : i32, i32, i32
  }
  func.func @transform_2(%arg0: i32) -> (i32, i32, i32) {
    %c0_i32 = arith.constant 0 : i32
    %c0_i32_0 = arith.constant 0 : i32
    %c0_i32_1 = arith.constant 0 : i32
    %c0_i32_2 = arith.constant 0 : i32
    return %c0_i32, %c0_i32_0, %c0_i32_1 : i32, i32, i32
  }
  func.func @transform_3(%arg0: i32) -> (i32, i32) {
    %c0_i32 = arith.constant 0 : i32
    %c0_i32_0 = arith.constant 0 : i32
    return %arg0, %c0_i32 : i32, i32
  }
}

</mosaic_0001>

<llo_original>
// kernel: tpu_custom_call.1
$region0: #{tpu_custom_call.1}
  #allocation0 [shape = 'u32[]', space=smem, size = 0x4, offset = 0x4, fixed_abs, tag = 'smem constant byte address 0x4 - core index']
  #allocation1 [shape = 'u32[72,128]{1,0:T(1,128)}', space=vmem, size = 0x9000, scoped, tag = 'internal scratch']
  %s0 = inlined_call_operand.hbm [shape: f32[8,16], index: 0, kind: input, shape index: {}]
  %s1 = inlined_call_operand.hbm [shape: bf16[5,128,128], index: 1, kind: input, shape index: {}]
  %s2 = inlined_call_operand.hbm [shape: f32[5,1,128], index: 2, kind: input, shape index: {}]
  %s3 = inlined_call_operand.hbm [shape: f32[8,16], index: 3, kind: output, shape index: {}]
  %s4 = sld [smem:[#allocation0]]
  $region34: #{tpu_custom_call.1} parent=0
    _
  %s6 = ssub.s32 1, %s4
  %s7 = scalar_select 0, %s6, %s4
  $region1: #{tpu_custom_call.1} parent=0
    #allocation2 [shape = 'u8[4096]{0}', space=vmem, size = 0x1000, scoped, tag = 'input window, operand 0, single buffered']
    #allocation3 [shape = 's32[1]{0}', space=sflag, size = 0x4, scoped, tag = 'scoped memory for tpu_custom_call.1']
    #allocation4 [shape = 's32[1]{0}', space=sflag, size = 0x4, scoped, tag = 'scoped memory for tpu_custom_call.1']
    #allocation5 [shape = 'u8[163840]{0}', space=vmem, size = 0x28000, scoped, tag = 'input window, operand 1, single buffered']
    #allocation6 [shape = 's32[1]{0}', space=sflag, size = 0x4, scoped, tag = 'scoped memory for tpu_custom_call.1']
    #allocation7 [shape = 'u8[2560]{0}', space=vmem, size = 0xc00, scoped, tag = 'input window, operand 2, single buffered']
    #allocation8 [shape = 'u8[4096]{0}', space=vmem, size = 0x1000, scoped, tag = 'output window, operand 0, single buffered']
    %8 = vsyncpa [#allocation3], 0
    %9 = vsyncpa [#allocation6], 0
    %10 = vsyncpa [#allocation4], 0
    // Predicated region
    $region2: #{tpu_custom_call.1} parent=1 // pred_check
      _
    $region3: #{tpu_custom_call.1} parent=1 // pred_check_branch
      %12 = sbr.rel (0) target = $region5
    $region4: #{tpu_custom_call.1} parent=1 // pred_region
      %14 = vsyncadd [#allocation3], 0
      %s16 = sshll.u32 %s0, 4
      %s17 = int_to_ptr.hbm [resolvable:$true] %s16
      %s18 = sshll.u32 [#allocation2], 4
      %s19 = int_to_ptr.vmem [resolvable:$true] %s18
      %21 = dma.hbm_to_vmem [thread:$0]  %s17, 128, %s19, [#allocation3]
    $region5: #{tpu_custom_call.1} parent=1 // pred_fallthru
      _
    // Predicated region
    $region6: #{tpu_custom_call.1} parent=1 // pred_check
      _
    $region7: #{tpu_custom_call.1} parent=1 // pred_check_branch
      %23 = sbr.rel (0) target = $region9
    $region8: #{tpu_custom_call.1} parent=1 // pred_region
      %25 = vsyncadd [#allocation6], 0
      %s26 = sshll.u32 %s1, 4
      %s27 = int_to_ptr.hbm [resolvable:$true] %s26
      %s28 = sshll.u32 [#allocation5], 4
      %s29 = int_to_ptr.vmem [resolvable:$true] %s28
      %34 = dma.hbm_to_vmem [thread:$0]  %s27, 5120, %s29, [#allocation6], 64, 64, 4
    $region9: #{tpu_custom_call.1} parent=1 // pred_fallthru
      _
    // Predicated region
    $region10: #{tpu_custom_call.1} parent=1 // pred_check
      _
    $region11: #{tpu_custom_call.1} parent=1 // pred_check_branch
      %36 = sbr.rel (0) target = $region13
    $region12: #{tpu_custom_call.1} parent=1 // pred_region
      %38 = vsyncadd [#allocation6], 0
      %s39 = sshll.u32 %s2, 4
      %s40 = int_to_ptr.hbm [resolvable:$true] %s39
      %s41 = sshll.u32 [#allocation7], 4
      %s42 = int_to_ptr.vmem [resolvable:$true] %s41
      %47 = dma.hbm_to_vmem [thread:$0]  %s40, 80, %s42, [#allocation6], 16, 16, 1
    $region13: #{tpu_custom_call.1} parent=1 // pred_fallthru
      _
    // Predicated region
    $region14: #{tpu_custom_call.1} parent=1 // pred_check
      _
    $region15: #{tpu_custom_call.1} parent=1 // pred_check_branch
      %49 = sbr.rel (0) target = $region17
    $region16: #{tpu_custom_call.1} parent=1 // pred_region
      %51 = dma.done [#allocation3], 128
    $region17: #{tpu_custom_call.1} parent=1 // pred_fallthru
      _
    // Predicated region
    $region18: #{tpu_custom_call.1} parent=1 // pred_check
      _
    $region19: #{tpu_custom_call.1} parent=1 // pred_check_branch
      %53 = sbr.rel (0) target = $region21
    $region20: #{tpu_custom_call.1} parent=1 // pred_region
      %55 = dma.done [#allocation6], 5120
    $region21: #{tpu_custom_call.1} parent=1 // pred_fallthru
      _
    // Predicated region
    $region22: #{tpu_custom_call.1} parent=1 // pred_check
      _
    $region23: #{tpu_custom_call.1} parent=1 // pred_check_branch
      %57 = sbr.rel (0) target = $region25
    $region24: #{tpu_custom_call.1} parent=1 // pred_region
      %59 = dma.done [#allocation6], 80
    $region25: #{tpu_custom_call.1} parent=1 // pred_fallthru
      _
    %v60 = vld [vmem:[#allocation2] sm:$0xff]
    %vm61 = vcmask 130048
    %v62 = vsel %vm61, %v60, 0.0
    %v63 = vpack.c.bf16 %v62, %v62
    %v64 = vld [vmem:[#allocation5] sm:$0xf]
    %v65 = vld [vmem:[#allocation5 + $0x4] sm:$0xf]
    %v66 = vld [vmem:[#allocation5 + $0x8] sm:$0xf]
    %v67 = vld [vmem:[#allocation5 + $0xc] sm:$0xf]
    %v68 = vld [vmem:[#allocation5 + $0x10] sm:$0xf]
    %v69 = vld [vmem:[#allocation5 + $0x14] sm:$0xf]
    %v70 = vld [vmem:[#allocation5 + $0x18] sm:$0xf]
    %v71 = vld [vmem:[#allocation5 + $0x1c] sm:$0xf]
    %v72 = vld [vmem:[#allocation5 + $0x20] sm:$0xf]
    %v73 = vld [vmem:[#allocation5 + $0x24] sm:$0xf]
    %v74 = vld [vmem:[#allocation5 + $0x28] sm:$0xf]
    %v75 = vld [vmem:[#allocation5 + $0x2c] sm:$0xf]
    %v76 = vld [vmem:[#allocation5 + $0x30] sm:$0xf]
    %v77 = vld [vmem:[#allocation5 + $0x34] sm:$0xf]
    %v78 = vld [vmem:[#allocation5 + $0x38] sm:$0xf]
    %v79 = vld [vmem:[#allocation5 + $0x3c] sm:$0xf]
    %v80 = vld [vmem:[#allocation7] sm:$0x1]
    %v82 = vperm.slane %v80, 0
    %v100 = vunpack.c.l.b16 %v64
    %v101 = vunpack.c.l.b16 %v65
    %v102 = vunpack.c.l.b16 %v66
    %v103 = vunpack.c.l.b16 %v67
    %v104 = vunpack.c.l.b16 %v68
    %v105 = vunpack.c.l.b16 %v69
    %v106 = vunpack.c.l.b16 %v70
    %v107 = vunpack.c.l.b16 %v71
    %v108 = vunpack.c.l.b16 %v72
    %v109 = vunpack.c.l.b16 %v73
    %v110 = vunpack.c.l.b16 %v74
    %v111 = vunpack.c.l.b16 %v75
    %v112 = vunpack.c.l.b16 %v76
    %v113 = vunpack.c.l.b16 %v77
    %v114 = vunpack.c.l.b16 %v78
    %v115 = vunpack.c.l.b16 %v79
    %v116 = vpack.c.b16 %v101, %v100
    %v117 = vpack.c.b16 %v103, %v102
    %v118 = vpack.c.b16 %v105, %v104
    %v119 = vpack.c.b16 %v107, %v106
    %v120 = vpack.c.b16 %v109, %v108
    %v121 = vpack.c.b16 %v111, %v110
    %v122 = vpack.c.b16 %v113, %v112
    %v123 = vpack.c.b16 %v115, %v114
    %132 = vmatpush.bf16.msra.mxu0 %v123
    %133 = vmatpush.bf16.msra.mxu0 %v122
    %134 = vmatpush.bf16.msra.mxu0 %v121
    %135 = vmatpush.bf16.msra.mxu0 %v120
    %136 = vmatpush.bf16.msra.mxu0 %v119
    %137 = vmatpush.bf16.msra.mxu0 %v118
    %138 = vmatpush.bf16.msra.mxu0 %v117
    %139 = vmatpush.bf16.msra.mxu0 %v116
    %140 = vmatmul.bf16.gmra.mxu0 %v63
    %v141 = vpop.f32.mrf.mxu0
    %v142 = vadd.f32 %v82, %v141
    %v143 = vpop.f32.mrf.mxu0
    %144 = vdwg.mxu0
    %v145 = vmul.f32 %v142, 0.5
    %v146 = vtanh.pop %v145
    %v147 = vmul.f32 %v146, 0.5
    %v148 = vadd.f32 %v147, 0.5
    %v149 = vpack.c.bf16 %v148, %v148
    %s150 = scalar_lea.vmem [#allocation5], 64
    %v151 = vld [vmem:[%s150] sm:$0xf]
    %v152 = vld [vmem:[%s150 + $0x4] sm:$0xf]
    %v153 = vld [vmem:[%s150 + $0x8] sm:$0xf]
    %v154 = vld [vmem:[%s150 + $0xc] sm:$0xf]
    %v155 = vld [vmem:[%s150 + $0x10] sm:$0xf]
    %v156 = vld [vmem:[%s150 + $0x14] sm:$0xf]
    %v157 = vld [vmem:[%s150 + $0x18] sm:$0xf]
    %v158 = vld [vmem:[%s150 + $0x1c] sm:$0xf]
    %v159 = vld [vmem:[%s150 + $0x20] sm:$0xf]
    %v160 = vld [vmem:[%s150 + $0x24] sm:$0xf]
    %v161 = vld [vmem:[%s150 + $0x28] sm:$0xf]
    %v162 = vld [vmem:[%s150 + $0x2c] sm:$0xf]
    %v163 = vld [vmem:[%s150 + $0x30] sm:$0xf]
    %v164 = vld [vmem:[%s150 + $0x34] sm:$0xf]
    %v165 = vld [vmem:[%s150 + $0x38] sm:$0xf]
    %v166 = vld [vmem:[%s150 + $0x3c] sm:$0xf]
    %s167 = scalar_lea.vmem [#allocation7], 1
    %v168 = vld [vmem:[%s167] sm:$0x1]
    %v170 = vperm.slane %v168, 0
    %v188 = vunpack.c.l.b16 %v151
    %v189 = vunpack.c.l.b16 %v152
    %v190 = vunpack.c.l.b16 %v153
    %v191 = vunpack.c.l.b16 %v154
    %v192 = vunpack.c.l.b16 %v155
    %v193 = vunpack.c.l.b16 %v156
    %v194 = vunpack.c.l.b16 %v157
    %v195 = vunpack.c.l.b16 %v158
    %v196 = vunpack.c.l.b16 %v159
    %v197 = vunpack.c.l.b16 %v160
    %v198 = vunpack.c.l.b16 %v161
    %v199 = vunpack.c.l.b16 %v162
    %v200 = vunpack.c.l.b16 %v163
    %v201 = vunpack.c.l.b16 %v164
    %v202 = vunpack.c.l.b16 %v165
    %v203 = vunpack.c.l.b16 %v166
    %v204 = vpack.c.b16 %v189, %v188
    %v205 = vpack.c.b16 %v191, %v190
    %v206 = vpack.c.b16 %v193, %v192
    %v207 = vpack.c.b16 %v195, %v194
    %v208 = vpack.c.b16 %v197, %v196
    %v209 = vpack.c.b16 %v199, %v198
    %v210 = vpack.c.b16 %v201, %v200
    %v211 = vpack.c.b16 %v203, %v202
    %220 = vmatpush.bf16.msra.mxu0 %v211
    %221 = vmatpush.bf16.msra.mxu0 %v210
    %222 = vmatpush.bf16.msra.mxu0 %v209
    %223 = vmatpush.bf16.msra.mxu0 %v208
    %224 = vmatpush.bf16.msra.mxu0 %v207
    %225 = vmatpush.bf16.msra.mxu0 %v206
    %226 = vmatpush.bf16.msra.mxu0 %v205
    %227 = vmatpush.bf16.msra.mxu0 %v204
    %228 = vmatmul.bf16.gmra.mxu0 %v149
    %v229 = vpop.f32.mrf.mxu0
    %v230 = vadd.f32 %v170, %v229
    %v231 = vpop.f32.mrf.mxu0
    %232 = vdwg.mxu0
    %v233 = vmul.f32 %v230, 0.5
    %v234 = vtanh.pop %v233
    %v235 = vmul.f32 %v234, 0.5
    %v236 = vadd.f32 %v235, 0.5
    %v237 = vpack.c.bf16 %v236, %v236
    %s238 = scalar_lea.vmem [#allocation5], 128
    %v239 = vld [vmem:[%s238] sm:$0xf]
    %v240 = vld [vmem:[%s238 + $0x4] sm:$0xf]
    %v241 = vld [vmem:[%s238 + $0x8] sm:$0xf]
    %v242 = vld [vmem:[%s238 + $0xc] sm:$0xf]
    %v243 = vld [vmem:[%s238 + $0x10] sm:$0xf]
    %v244 = vld [vmem:[%s238 + $0x14] sm:$0xf]
    %v245 = vld [vmem:[%s238 + $0x18] sm:$0xf]
    %v246 = vld [vmem:[%s238 + $0x1c] sm:$0xf]
    %v247 = vld [vmem:[%s238 + $0x20] sm:$0xf]
    %v248 = vld [vmem:[%s238 + $0x24] sm:$0xf]
    %v249 = vld [vmem:[%s238 + $0x28] sm:$0xf]
    %v250 = vld [vmem:[%s238 + $0x2c] sm:$0xf]
    %v251 = vld [vmem:[%s238 + $0x30] sm:$0xf]
    %v252 = vld [vmem:[%s238 + $0x34] sm:$0xf]
    %v253 = vld [vmem:[%s238 + $0x38] sm:$0xf]
    %v254 = vld [vmem:[%s238 + $0x3c] sm:$0xf]
    %s255 = scalar_lea.vmem [#allocation7], 2
    %v256 = vld [vmem:[%s255] sm:$0x1]
    %v258 = vperm.slane %v256, 0
    %v276 = vunpack.c.l.b16 %v239
    %v277 = vunpack.c.l.b16 %v240
    %v278 = vunpack.c.l.b16 %v241
    %v279 = vunpack.c.l.b16 %v242
    %v280 = vunpack.c.l.b16 %v243
    %v281 = vunpack.c.l.b16 %v244
    %v282 = vunpack.c.l.b16 %v245
    %v283 = vunpack.c.l.b16 %v246
    %v284 = vunpack.c.l.b16 %v247
    %v285 = vunpack.c.l.b16 %v248
    %v286 = vunpack.c.l.b16 %v249
    %v287 = vunpack.c.l.b16 %v250
    %v288 = vunpack.c.l.b16 %v251
    %v289 = vunpack.c.l.b16 %v252
    %v290 = vunpack.c.l.b16 %v253
    %v291 = vunpack.c.l.b16 %v254
    %v292 = vpack.c.b16 %v277, %v276
    %v293 = vpack.c.b16 %v279, %v278
    %v294 = vpack.c.b16 %v281, %v280
    %v295 = vpack.c.b16 %v283, %v282
    %v296 = vpack.c.b16 %v285, %v284
    %v297 = vpack.c.b16 %v287, %v286
    %v298 = vpack.c.b16 %v289, %v288
    %v299 = vpack.c.b16 %v291, %v290
    %308 = vmatpush.bf16.msra.mxu0 %v299
    %309 = vmatpush.bf16.msra.mxu0 %v298
    %310 = vmatpush.bf16.msra.mxu0 %v297
    %311 = vmatpush.bf16.msra.mxu0 %v296
    %312 = vmatpush.bf16.msra.mxu0 %v295
    %313 = vmatpush.bf16.msra.mxu0 %v294
    %314 = vmatpush.bf16.msra.mxu0 %v293
    %315 = vmatpush.bf16.msra.mxu0 %v292
    %316 = vmatmul.bf16.gmra.mxu0 %v237
    %v317 = vpop.f32.mrf.mxu0
    %v318 = vadd.f32 %v258, %v317
    %v319 = vpop.f32.mrf.mxu0
    %320 = vdwg.mxu0
    %v321 = vmul.f32 %v318, 0.5
    %v322 = vtanh.pop %v321
    %v323 = vmul.f32 %v322, 0.5
    %v324 = vadd.f32 %v323, 0.5
    %v325 = vpack.c.bf16 %v324, %v324
    %s326 = scalar_lea.vmem [#allocation5], 192
    %v327 = vld [vmem:[%s326] sm:$0xf]
    %v328 = vld [vmem:[%s326 + $0x4] sm:$0xf]
    %v329 = vld [vmem:[%s326 + $0x8] sm:$0xf]
    %v330 = vld [vmem:[%s326 + $0xc] sm:$0xf]
    %v331 = vld [vmem:[%s326 + $0x10] sm:$0xf]
    %v332 = vld [vmem:[%s326 + $0x14] sm:$0xf]
    %v333 = vld [vmem:[%s326 + $0x18] sm:$0xf]
    %v334 = vld [vmem:[%s326 + $0x1c] sm:$0xf]
    %v335 = vld [vmem:[%s326 + $0x20] sm:$0xf]
    %v336 = vld [vmem:[%s326 + $0x24] sm:$0xf]
    %v337 = vld [vmem:[%s326 + $0x28] sm:$0xf]
    %v338 = vld [vmem:[%s326 + $0x2c] sm:$0xf]
    %v339 = vld [vmem:[%s326 + $0x30] sm:$0xf]
    %v340 = vld [vmem:[%s326 + $0x34] sm:$0xf]
    %v341 = vld [vmem:[%s326 + $0x38] sm:$0xf]
    %v342 = vld [vmem:[%s326 + $0x3c] sm:$0xf]
    %s343 = scalar_lea.vmem [#allocation7], 3
    %v344 = vld [vmem:[%s343] sm:$0x1]
    %v346 = vperm.slane %v344, 0
    %v364 = vunpack.c.l.b16 %v327
    %v365 = vunpack.c.l.b16 %v328
    %v366 = vunpack.c.l.b16 %v329
    %v367 = vunpack.c.l.b16 %v330
    %v368 = vunpack.c.l.b16 %v331
    %v369 = vunpack.c.l.b16 %v332
    %v370 = vunpack.c.l.b16 %v333
    %v371 = vunpack.c.l.b16 %v334
    %v372 = vunpack.c.l.b16 %v335
    %v373 = vunpack.c.l.b16 %v336
    %v374 = vunpack.c.l.b16 %v337
    %v375 = vunpack.c.l.b16 %v338
    %v376 = vunpack.c.l.b16 %v339
    %v377 = vunpack.c.l.b16 %v340
    %v378 = vunpack.c.l.b16 %v341
    %v379 = vunpack.c.l.b16 %v342
    %v380 = vpack.c.b16 %v365, %v364
    %v381 = vpack.c.b16 %v367, %v366
    %v382 = vpack.c.b16 %v369, %v368
    %v383 = vpack.c.b16 %v371, %v370
    %v384 = vpack.c.b16 %v373, %v372
    %v385 = vpack.c.b16 %v375, %v374
    %v386 = vpack.c.b16 %v377, %v376
    %v387 = vpack.c.b16 %v379, %v378
    %396 = vmatpush.bf16.msra.mxu0 %v387
    %397 = vmatpush.bf16.msra.mxu0 %v386
    %398 = vmatpush.bf16.msra.mxu0 %v385
    %399 = vmatpush.bf16.msra.mxu0 %v384
    %400 = vmatpush.bf16.msra.mxu0 %v383
    %401 = vmatpush.bf16.msra.mxu0 %v382
    %402 = vmatpush.bf16.msra.mxu0 %v381
    %403 = vmatpush.bf16.msra.mxu0 %v380
    %404 = vmatmul.bf16.gmra.mxu0 %v325
    %v405 = vpop.f32.mrf.mxu0
    %v406 = vadd.f32 %v346, %v405
    %v407 = vpop.f32.mrf.mxu0
    %408 = vdwg.mxu0
    %v409 = vmul.f32 %v406, 0.5
    %v410 = vtanh.pop %v409
    %v411 = vmul.f32 %v410, 0.5
    %v412 = vadd.f32 %v411, 0.5
    %v413 = vpack.c.bf16 %v412, %v412
    %s414 = scalar_lea.vmem [#allocation5], 256
    %v415 = vld [vmem:[%s414] sm:$0xf]
    %v416 = vld [vmem:[%s414 + $0x4] sm:$0xf]
    %v417 = vld [vmem:[%s414 + $0x8] sm:$0xf]
    %v418 = vld [vmem:[%s414 + $0xc] sm:$0xf]
    %v419 = vld [vmem:[%s414 + $0x10] sm:$0xf]
    %v420 = vld [vmem:[%s414 + $0x14] sm:$0xf]
    %v421 = vld [vmem:[%s414 + $0x18] sm:$0xf]
    %v422 = vld [vmem:[%s414 + $0x1c] sm:$0xf]
    %v423 = vld [vmem:[%s414 + $0x20] sm:$0xf]
    %v424 = vld [vmem:[%s414 + $0x24] sm:$0xf]
    %v425 = vld [vmem:[%s414 + $0x28] sm:$0xf]
    %v426 = vld [vmem:[%s414 + $0x2c] sm:$0xf]
    %v427 = vld [vmem:[%s414 + $0x30] sm:$0xf]
    %v428 = vld [vmem:[%s414 + $0x34] sm:$0xf]
    %v429 = vld [vmem:[%s414 + $0x38] sm:$0xf]
    %v430 = vld [vmem:[%s414 + $0x3c] sm:$0xf]
    %s431 = scalar_lea.vmem [#allocation7], 4
    %v432 = vld [vmem:[%s431] sm:$0x1]
    %v434 = vperm.slane %v432, 0
    %v452 = vunpack.c.l.b16 %v415
    %v453 = vunpack.c.l.b16 %v416
    %v454 = vunpack.c.l.b16 %v417
    %v455 = vunpack.c.l.b16 %v418
    %v456 = vunpack.c.l.b16 %v419
    %v457 = vunpack.c.l.b16 %v420
    %v458 = vunpack.c.l.b16 %v421
    %v459 = vunpack.c.l.b16 %v422
    %v460 = vunpack.c.l.b16 %v423
    %v461 = vunpack.c.l.b16 %v424
    %v462 = vunpack.c.l.b16 %v425
    %v463 = vunpack.c.l.b16 %v426
    %v464 = vunpack.c.l.b16 %v427
    %v465 = vunpack.c.l.b16 %v428
    %v466 = vunpack.c.l.b16 %v429
    %v467 = vunpack.c.l.b16 %v430
    %v468 = vpack.c.b16 %v453, %v452
    %v469 = vpack.c.b16 %v455, %v454
    %v470 = vpack.c.b16 %v457, %v456
    %v471 = vpack.c.b16 %v459, %v458
    %v472 = vpack.c.b16 %v461, %v460
    %v473 = vpack.c.b16 %v463, %v462
    %v474 = vpack.c.b16 %v465, %v464
    %v475 = vpack.c.b16 %v467, %v466
    %484 = vmatpush.bf16.msra.mxu0 %v475
    %485 = vmatpush.bf16.msra.mxu0 %v474
    %486 = vmatpush.bf16.msra.mxu0 %v473
    %487 = vmatpush.bf16.msra.mxu0 %v472
    %488 = vmatpush.bf16.msra.mxu0 %v471
    %489 = vmatpush.bf16.msra.mxu0 %v470
    %490 = vmatpush.bf16.msra.mxu0 %v469
    %491 = vmatpush.bf16.msra.mxu0 %v468
    %492 = vmatmul.bf16.gmra.mxu0 %v413
    %v493 = vpop.f32.mrf.mxu0
    %v494 = vadd.f32 %v434, %v493
    %v495 = vpop.f32.mrf.mxu0
    %496 = vdwg.mxu0
    %497 = vst.msk [vmem:[#allocation8] sm:$0xff] %vm61, %v494
    // Predicated region
    $region26: #{tpu_custom_call.1} parent=1 // pred_check
      _
    $region27: #{tpu_custom_call.1} parent=1 // pred_check_branch
      %499 = sbr.rel (0) target = $region29
    $region28: #{tpu_custom_call.1} parent=1 // pred_region
      %501 = vsyncadd [#allocation4], 0
      %s503 = sshll.u32 [#allocation8], 4
      %s504 = int_to_ptr.vmem [resolvable:$true] %s503
      %s505 = sshll.u32 %s3, 4
      %s506 = int_to_ptr.hbm [resolvable:$true] %s505
      %508 = dma.vmem_to_hbm [thread:$0]  %s504, 128, %s506, [#allocation4]
    $region29: #{tpu_custom_call.1} parent=1 // pred_fallthru
      _
    // Predicated region
    $region30: #{tpu_custom_call.1} parent=1 // pred_check
      _
    $region31: #{tpu_custom_call.1} parent=1 // pred_check_branch
      %510 = sbr.rel (0) target = $region33
    $region32: #{tpu_custom_call.1} parent=1 // pred_region
      %512 = dma.done [#allocation4], 128
    $region33: #{tpu_custom_call.1} parent=1 // pred_fallthru
      _
    %513 = vsyncpa [#allocation3], 1
    %514 = vsyncpa [#allocation6], 1
    %515 = vsyncpa [#allocation4], 1

</llo_original>
